<compile_context>
chip_gen: v6e
topology: v6e:2x2x1
jax: 0.10.0
libtpu: 0.0.40
codegen_flags: <defaults>
</compile_context>

<pallas_src>
import functools

import jax
import jax.numpy as jnp
from jax.experimental import pallas as pl
from jax.experimental.pallas import tpu as pltpu

NUM_CLASSES = 2   # self.linear = nn.Linear(hidden_size, 2, bias=True)
C_PAD = 128       # lane-dense padded class dim


def _round_up(x, m):
    return ((x + m - 1) // m) * m


def etc_head_loss_kernel(x_ref, w_ref, b_ref, lbl_ref, loss_ref, *logits_out,
                         total_rows, tile_rows, num_classes):
    """One batch tile of: linear head + softmax cross-entropy partial sum.

    x_ref:      [TB, H]      pooled features, bf16 (VMEM)
    w_ref:      [H, C_PAD]   head weight (pre-transposed, cols >= num_classes zero), bf16 (VMEM)
    b_ref:      [1, C_PAD]   head bias row (padded with zeros), f32 (VMEM)
    lbl_ref:    [TB, 1]      int32 labels (VMEM)
    loss_ref:   [1, 1]       per-tile sum of NLL over valid rows (SMEM)
    logits_out: optional ([TB, C_PAD] bf16 VMEM) lane-dense raw logits
    """
    i = pl.program_id(0)

    x = x_ref[...]                                   # [TB, H] bf16
    w = w_ref[...]                                   # [H, C_PAD] bf16

    # logits = x @ W : natural [M,K]x[K,N] MXU form, f32 accumulation.
    logits = jax.lax.dot_general(
        x, w,
        dimension_numbers=(((1,), (0,)), ((), ())),
        preferred_element_type=jnp.float32)          # [TB, C_PAD] f32
    logits = logits + b_ref[...]                     # broadcast [1, C_PAD]

    # Optional lane-dense bf16 logits store (predict / eval path only).
    if logits_out:
        logits_out[0][...] = logits.astype(logits_out[0].dtype)

    # Numerically-stable log-softmax over the *valid* classes only.
    class_iota = jax.lax.broadcasted_iota(jnp.int32, (tile_rows, C_PAD), 1)
    z_in = jnp.where(class_iota < num_classes, logits, jnp.float32(-1e30))
    m = jnp.max(z_in, axis=-1, keepdims=True)
    z = z_in - m
    lse = jnp.log(jnp.sum(jnp.exp(z), axis=-1, keepdims=True))
    logp = z - lse                                   # [TB, C_PAD]

    # Cross entropy: select the label column via in-kernel one-hot.
    labels = lbl_ref[...]                            # [TB, 1] int32
    onehot = class_iota == labels                    # [TB, C_PAD] bool
    nll = -jnp.sum(jnp.where(onehot, logp, 0.0), axis=-1, keepdims=True)  # [TB, 1]

    # Mask rows past the true batch size (padding rows of the last tile).
    row_iota = jax.lax.broadcasted_iota(jnp.int32, (tile_rows, 1), 0)
    valid_row = (i * tile_rows + row_iota) < total_rows
    loss_ref[0, 0] = jnp.sum(jnp.where(valid_row, nll, 0.0))


def etc_head_loss(pooled, weight, bias, labels, *, tb=None, return_logits=False):
    """pooled: [B, H]; weight: [C, H] (nn.Linear layout); bias: [C]; labels: [B] int.

    Returns mean CE loss, or (loss, logits[B, C] f32) when return_logits=True.
    """
    pooled = jnp.asarray(pooled)
    B, H = pooled.shape
    C = weight.shape[0]

    # Batch tile selection (per perf review):
    #  - small B: single tile (launch/overhead-bound, multi-tile only adds cost)
    #  - moderate/large B: >= 2 tiles (shards across v7x's 2 TCs), tiles up to
    #    2048 rows (per-tile VMEM is still only a few MiB at BERT-scale H).
    if tb is None:
        if B <= 128:
            tb = _round_up(B, 16)
        else:
            tb = min(2048, _round_up(pl.cdiv(B, 2), 16))
    B_pad = _round_up(B, tb)
    nt = B_pad // tb

    # Boundary casts / padding (glue).
    x = jnp.asarray(pooled, jnp.bfloat16)
    lbl = jnp.asarray(labels, jnp.int32).reshape(B, 1)
    if B_pad != B:
        x = jnp.pad(x, ((0, B_pad - B), (0, 0)))
        lbl = jnp.pad(lbl, ((0, B_pad - B), (0, 0)))
    # Pre-transposed, class-padded weight [H, C_PAD]; padded bias row [1, C_PAD].
    w_pad = jnp.zeros((H, C_PAD), jnp.bfloat16).at[:, :C].set(
        jnp.asarray(weight, jnp.bfloat16).T)
    b_pad = jnp.zeros((1, C_PAD), jnp.float32).at[0, :C].set(
        jnp.asarray(bias, jnp.float32))

    kernel = functools.partial(
        etc_head_loss_kernel, total_rows=B, tile_rows=tb, num_classes=C)

    out_specs = [
        pl.BlockSpec((1, 1), lambda i: (i, 0),
                     memory_space=pltpu.MemorySpace.SMEM),         # per-tile loss sum
    ]
    out_shape = [jax.ShapeDtypeStruct((nt, 1), jnp.float32)]
    bytes_accessed = (B_pad * H * 2 + H * C_PAD * 2 + C_PAD * 4
                      + B_pad * 4 + nt * 4)
    if return_logits:
        out_specs.append(pl.BlockSpec((tb, C_PAD), lambda i: (i, 0)))  # lane-dense bf16 logits
        out_shape.append(jax.ShapeDtypeStruct((B_pad, C_PAD), jnp.bfloat16))
        bytes_accessed += B_pad * C_PAD * 2

    outs = pl.pallas_call(
        kernel,
        grid=(nt,),
        in_specs=[
            pl.BlockSpec((tb, H), lambda i: (i, 0)),               # pooled (bf16, VMEM)
            pl.BlockSpec((H, C_PAD), lambda i: (0, 0)),            # weight, resident (bf16, VMEM)
            pl.BlockSpec((1, C_PAD), lambda i: (0, 0)),            # bias row, resident (f32, VMEM)
            pl.BlockSpec((tb, 1), lambda i: (i, 0)),               # int32 labels (VMEM)
        ],
        out_specs=tuple(out_specs),
        out_shape=tuple(out_shape),
        compiler_params=pltpu.CompilerParams(
            dimension_semantics=("parallel",)),                    # shards tiles across v7x's 2 TCs
        cost_estimate=pl.CostEstimate(
            flops=2 * B_pad * H * C_PAD,
            transcendentals=B_pad * C_PAD,
            bytes_accessed=bytes_accessed,
        ),
    )(x, w_pad, b_pad, lbl)

    if return_logits:
        partial_loss, logits_pad = outs
        loss = jnp.sum(partial_loss) / B                # mean over the *true* batch size
        logits = logits_pad[:B, :C].astype(jnp.float32)
        return loss, logits
    partial_loss = outs[0] if isinstance(outs, (tuple, list)) else outs
    return jnp.sum(partial_loss) / B


def _reference(pooled, weight, bias, labels):
    # Emulate the kernel's bf16 input rounding so the comparison is tight.
    x = pooled.astype(jnp.bfloat16).astype(jnp.float32)
    w = weight.astype(jnp.bfloat16).astype(jnp.float32)
    logits = x @ w.T + bias
    logp = jax.nn.log_softmax(logits, axis=-1)
    nll = -jnp.take_along_axis(logp, labels[:, None], axis=-1)[:, 0]
    return jnp.mean(nll), logits


if __name__ == "__main__":
    key = jax.random.PRNGKey(0)
    k_pool, k_w, k_b, k_lbl = jax.random.split(key, 4)

    batch = 32       # number of texts in batch.batch_etc_text
    hidden = 32      # stands in for base_config.hidden_size

    # Deterministic synthetic "pooler_output" + head parameters.
    pooled = jax.random.normal(k_pool, (batch, hidden), dtype=jnp.float32)
    weight = 0.02 * jax.random.normal(k_w, (NUM_CLASSES, hidden), dtype=jnp.float32)
    bias = 0.01 * jax.random.normal(k_b, (NUM_CLASSES,), dtype=jnp.float32)
    labels = jax.random.randint(k_lbl, (batch,), 0, NUM_CLASSES, dtype=jnp.int32)

    ref_loss, ref_logits = _reference(pooled, weight, bias, labels)

    # Training forward() path: loss only (no logits HBM write), single tile.
    loss = etc_head_loss(pooled, weight, bias, labels)
    jax.block_until_ready(loss)
    assert jnp.allclose(loss, ref_loss, atol=1e-3, rtol=1e-3), (loss, ref_loss)

    # predict()-style path with logits, forced multi-tile (tb=16 -> 2 tiles).
    loss2, logits = etc_head_loss(pooled, weight, bias, labels, tb=16,
                                  return_logits=True)
    jax.block_until_ready((loss2, logits))
    assert jnp.allclose(loss2, ref_loss, atol=1e-3, rtol=1e-3), (loss2, ref_loss)
    assert jnp.allclose(logits, ref_logits, atol=1e-2, rtol=1e-2)

    # Ragged last tile (B not a multiple of tb) exercises the row masking.
    batch_r = 37
    pooled_r = jax.random.normal(k_pool, (batch_r, hidden), dtype=jnp.float32)
    labels_r = jax.random.randint(k_lbl, (batch_r,), 0, NUM_CLASSES,
                                  dtype=jnp.int32)
    loss_r, logits_r = etc_head_loss(pooled_r, weight, bias, labels_r, tb=16,
                                     return_logits=True)
    jax.block_until_ready((loss_r, logits_r))
    ref_loss_r, ref_logits_r = _reference(pooled_r, weight, bias, labels_r)
    assert jnp.allclose(loss_r, ref_loss_r, atol=1e-3, rtol=1e-3)
    assert jnp.allclose(logits_r, ref_logits_r, atol=1e-2, rtol=1e-2)

    # predict() path: argmax over the same logits
    preds = jnp.argmax(logits, axis=1)
    assert preds.shape == (batch,)

    print("KERNEL_OK")
</pallas_src>

<mosaic_0001>
module attributes {stable_mosaic.version = 11 : i64} {
  func.func @etc_head_loss_kernel(%arg0: i32, %arg1: memref<32x32xbf16, #tpu.memory_space<vmem>>, %arg2: memref<32x128xbf16, #tpu.memory_space<vmem>>, %arg3: memref<1x128xf32, #tpu.memory_space<vmem>>, %arg4: memref<32x1xi32, #tpu.memory_space<vmem>>, %arg5: memref<1x1xf32, #tpu.memory_space<smem>>) attributes {dimension_semantics = [#tpu.dimension_semantics<parallel>], iteration_bounds = array<i64: 1>, scalar_prefetch = 0 : i64, scratch_operands = 0 : i64, tpu.core_type = #tpu.core_type<tc>, window_params = [{transform_indices = @transform_0, window_bounds = array<i64: 32, 32>}, {pipeline_mode = #tpu.pipeline_mode<synchronous>, transform_indices = @transform_1, window_bounds = array<i64: 32, 128>}, {pipeline_mode = #tpu.pipeline_mode<synchronous>, transform_indices = @transform_2, window_bounds = array<i64: 1, 128>}, {transform_indices = @transform_3, window_bounds = array<i64: 32, 1>}, {transform_indices = @transform_4, window_bounds = array<i64: 1, 1>}]} {
    %c0 = arith.constant 0 : index
    %c0_0 = arith.constant 0 : index
    %0 = vector.load %arg1[%c0, %c0_0] : memref<32x32xbf16, #tpu.memory_space<vmem>>, vector<32x32xbf16>
    %c0_1 = arith.constant 0 : index
    %c0_2 = arith.constant 0 : index
    %1 = vector.load %arg2[%c0_1, %c0_2] : memref<32x128xbf16, #tpu.memory_space<vmem>>, vector<32x128xbf16>
    %cst = arith.constant dense<0.000000e+00> : vector<32x128xf32>
    %2 = tpu.matmul %0, %1, %cst {dimension_numbers = #tpu.dot_dimension_numbers<[1], [0], [0], [1], [0, 0, 1, 1], [], []>} : vector<32x32xbf16>, vector<32x128xbf16>, vector<32x128xf32> -> vector<32x128xf32>
    %c0_3 = arith.constant 0 : index
    %c0_4 = arith.constant 0 : index
    %3 = vector.load %arg3[%c0_3, %c0_4] : memref<1x128xf32, #tpu.memory_space<vmem>>, vector<1x128xf32>
    %4 = vector.broadcast %3 : vector<1x128xf32> to vector<32x128xf32>
    %5 = arith.addf %2, %4 : vector<32x128xf32>
    %6 = tpu.iota {dimensions = array<i32: 1>} : vector<32x128xi32>
    %c2_i32 = arith.constant 2 : i32
    %7 = vector.broadcast %c2_i32 : i32 to vector<32x128xi32>
    %8 = arith.cmpi slt, %6, %7 : vector<32x128xi32>
    %cst_5 = arith.constant -1.000000e+30 : f32
    %9 = vector.broadcast %cst_5 : f32 to vector<32x128xf32>
    %10 = arith.select %8, %5, %9 : vector<32x128xi1>, vector<32x128xf32>
    %cst_6 = arith.constant dense<0xFF800000> : vector<32xf32>
    %11 = vector.multi_reduction <maximumf>, %10, %cst_6 [1] : vector<32x128xf32> to vector<32xf32>
    %12 = vector.shape_cast %11 : vector<32xf32> to vector<32x1xf32>
    %13 = vector.broadcast %12 : vector<32x1xf32> to vector<32x128xf32>
    %14 = arith.subf %10, %13 : vector<32x128xf32>
    %15 = math.exp %14 : vector<32x128xf32>
    %cst_7 = arith.constant dense<0.000000e+00> : vector<32xf32>
    %16 = vector.multi_reduction <add>, %15, %cst_7 [1] : vector<32x128xf32> to vector<32xf32>
    %17 = vector.shape_cast %16 : vector<32xf32> to vector<32x1xf32>
    %18 = math.log %17 : vector<32x1xf32>
    %19 = vector.broadcast %18 : vector<32x1xf32> to vector<32x128xf32>
    %20 = arith.subf %14, %19 : vector<32x128xf32>
    %c0_8 = arith.constant 0 : index
    %c0_9 = arith.constant 0 : index
    %21 = vector.load %arg4[%c0_8, %c0_9] : memref<32x1xi32, #tpu.memory_space<vmem>>, vector<32x1xi32>
    %22 = vector.broadcast %21 : vector<32x1xi32> to vector<32x128xi32>
    %23 = arith.cmpi eq, %6, %22 : vector<32x128xi32>
    %cst_10 = arith.constant 0.000000e+00 : f32
    %24 = vector.broadcast %cst_10 : f32 to vector<32x128xf32>
    %25 = arith.select %23, %20, %24 : vector<32x128xi1>, vector<32x128xf32>
    %cst_11 = arith.constant dense<0.000000e+00> : vector<32xf32>
    %26 = vector.multi_reduction <add>, %25, %cst_11 [1] : vector<32x128xf32> to vector<32xf32>
    %27 = vector.shape_cast %26 : vector<32xf32> to vector<32x1xf32>
    %cst_12 = arith.constant 0.000000e+00 : f32
    %28 = vector.broadcast %cst_12 : f32 to vector<32x1xf32>
    %29 = arith.subf %28, %27 : vector<32x1xf32>
    %30 = tpu.iota {dimensions = array<i32: 0>} : vector<32x1xi32>
    %c32_i32 = arith.constant 32 : i32
    %31 = arith.muli %arg0, %c32_i32 : i32
    %32 = vector.broadcast %31 : i32 to vector<32x1xi32>
    %33 = arith.addi %32, %30 : vector<32x1xi32>
    %c32_i32_13 = arith.constant 32 : i32
    %34 = vector.broadcast %c32_i32_13 : i32 to vector<32x1xi32>
    %35 = arith.cmpi slt, %33, %34 : vector<32x1xi32>
    %cst_14 = arith.constant 0.000000e+00 : f32
    %36 = vector.broadcast %cst_14 : f32 to vector<32x1xf32>
    %37 = arith.select %35, %29, %36 : vector<32x1xi1>, vector<32x1xf32>
    %38 = vector.shape_cast %37 : vector<32x1xf32> to vector<1x32x1xf32>
    %cst_15 = arith.constant dense<0.000000e+00> : vector<1xf32>
    %39 = vector.multi_reduction <add>, %38, %cst_15 [1, 2] : vector<1x32x1xf32> to vector<1xf32>
    %40 = vector.shape_cast %39 : vector<1xf32> to vector<1x1x1xf32>
    %41 = vector.extract %40[0, 0, 0] : f32 from vector<1x1x1xf32>
    %c0_16 = arith.constant 0 : index
    %c0_17 = arith.constant 0 : index
    %42 = memref.load %arg5[%c0_16, %c0_17] : memref<1x1xf32, #tpu.memory_space<smem>>
    memref.store %41, %arg5[%c0_16, %c0_17] : memref<1x1xf32, #tpu.memory_space<smem>>
    return
  }
  func.func @transform_0(%arg0: i32) -> (i32, i32) {
    %c0_i32 = arith.constant 0 : i32
    %c0_i32_0 = arith.constant 0 : i32
    return %arg0, %c0_i32 : i32, i32
  }
  func.func @transform_1(%arg0: i32) -> (i32, i32) {
    %c0_i32 = arith.constant 0 : i32
    %c0_i32_0 = arith.constant 0 : i32
    %c0_i32_1 = arith.constant 0 : i32
    return %c0_i32, %c0_i32_0 : i32, i32
  }
  func.func @transform_2(%arg0: i32) -> (i32, i32) {
    %c0_i32 = arith.constant 0 : i32
    %c0_i32_0 = arith.constant 0 : i32
    %c0_i32_1 = arith.constant 0 : i32
    return %c0_i32, %c0_i32_0 : i32, i32
  }
  func.func @transform_3(%arg0: i32) -> (i32, i32) {
    %c0_i32 = arith.constant 0 : i32
    %c0_i32_0 = arith.constant 0 : i32
    return %arg0, %c0_i32 : i32, i32
  }
  func.func @transform_4(%arg0: i32) -> (i32, i32) {
    %c0_i32 = arith.constant 0 : i32
    %c0_i32_0 = arith.constant 0 : i32
    return %arg0, %c0_i32 : i32, i32
  }
}

</mosaic_0001>

<llo_original>
// kernel: tpu_custom_call.1
$region0: #{tpu_custom_call.1}
  #allocation0 [shape = 'u32[]', space=smem, size = 0x4, offset = 0x4, fixed_abs, tag = 'smem constant byte address 0x4 - core index']
  #allocation1 [shape = 'u32[144,128]{1,0:T(1,128)}', space=vmem, size = 0x12000, scoped, tag = 'internal scratch']
  %s0 = inlined_call_operand.vmem [shape: bf16[32,32], index: 0, kind: input, shape index: {}]
  %s1 = inlined_call_operand.vmem [shape: bf16[32,128], index: 1, kind: input, shape index: {}]
  %s2 = inlined_call_operand.vmem [shape: f32[1,128], index: 2, kind: input, shape index: {}]
  %s3 = inlined_call_operand.vmem [shape: s32[32,1], index: 3, kind: input, shape index: {}]
  %s4 = inlined_call_operand.hbm [shape: f32[1,1], index: 4, kind: output, shape index: {}]
  %s5 = sld [smem:[#allocation0]]
  $region26: #{tpu_custom_call.1} parent=0
    _
  %s7 = ssub.s32 1, %s5
  %s8 = scalar_select 0, %s7, %s5
  $region1: #{tpu_custom_call.1} parent=0
    #allocation2 [shape = 'u8[512]{0}', space=smem, size = 0x200, scoped, tag = 'output window, operand 0, single buffered']
    #allocation3 [shape = 's32[1]{0}', space=sflag, size = 0x4, scoped, tag = 'scoped memory for tpu_custom_call.1']
    %9 = vsyncpa [#allocation3], 0
    // Predicated region
    $region2: #{tpu_custom_call.1} parent=1 // pred_check
      _
    $region3: #{tpu_custom_call.1} parent=1 // pred_check_branch
      %11 = sbr.rel (0) target = $region5
    $region4: #{tpu_custom_call.1} parent=1 // pred_region
      _
    $region5: #{tpu_custom_call.1} parent=1 // pred_fallthru
      _
    // Predicated region
    $region6: #{tpu_custom_call.1} parent=1 // pred_check
      _
    $region7: #{tpu_custom_call.1} parent=1 // pred_check_branch
      %13 = sbr.rel (0) target = $region9
    $region8: #{tpu_custom_call.1} parent=1 // pred_region
      _
    $region9: #{tpu_custom_call.1} parent=1 // pred_fallthru
      _
    // Predicated region
    $region10: #{tpu_custom_call.1} parent=1 // pred_check
      _
    $region11: #{tpu_custom_call.1} parent=1 // pred_check_branch
      %15 = sbr.rel (0) target = $region13
    $region12: #{tpu_custom_call.1} parent=1 // pred_region
      _
    $region13: #{tpu_custom_call.1} parent=1 // pred_fallthru
      _
    // Predicated region
    $region14: #{tpu_custom_call.1} parent=1 // pred_check
      _
    $region15: #{tpu_custom_call.1} parent=1 // pred_check_branch
      %17 = sbr.rel (0) target = $region17
    $region16: #{tpu_custom_call.1} parent=1 // pred_region
      _
    $region17: #{tpu_custom_call.1} parent=1 // pred_fallthru
      _
    %v19 = vld [vmem:[%s0] sm:$0xf]
    %v20 = vld [vmem:[%s0 + $0x4] sm:$0xf]
    %v21 = vld [vmem:[%s0 + $0x8] sm:$0xf]
    %v22 = vld [vmem:[%s0 + $0xc] sm:$0xf]
    %v23 = vld [vmem:[%s1] sm:$0xf]
    %v24 = vld [vmem:[%s1 + $0x4] sm:$0xf]
    %v25 = vld [vmem:[%s1 + $0x8] sm:$0xf]
    %v26 = vld [vmem:[%s1 + $0xc] sm:$0xf]
    %v27 = vld [vmem:[%s2] sm:$0x1]
    %v29 = vlaneseq
    %v30 = vshrl.u32 %v29, 7
    %v31 = vsub.s32 0, %v30
    %v32 = vrot.slane %v27, %v31
    %v38 = vunpack.c.l.b16 %v19
    %v39 = vunpack.c.l.b16 %v20
    %v40 = vunpack.c.l.b16 %v21
    %v41 = vunpack.c.l.b16 %v22
    %v42 = vpack.c.b16 %v39, %v38
    %v43 = vpack.c.b16 %v41, %v40
    %v48 = vunpack.c.l.b16 %v23
    %v49 = vunpack.c.l.b16 %v24
    %v50 = vunpack.c.l.b16 %v25
    %v51 = vunpack.c.l.b16 %v26
    %v52 = vpack.c.b16 %v49, %v48
    %v53 = vpack.c.b16 %v51, %v50
    %vm56 = vcmask 261120
    %v58 = vsel %vm56, %v42, 0
    %v61 = vsel %vm56, %v43, 0
    %63 = vmatprep.subr.bf16.mxu0 0
    %64 = vmatpush1.bf16.msra.mxu0 0
    %65 = vmatprep.subr.bf16.mxu0 0
    %66 = vmatpush1.bf16.msra.mxu0 0
    %67 = vmatprep.subr.bf16.mxu0 0
    %68 = vmatpush1.bf16.msra.mxu0 0
    %69 = vmatprep.subr.bf16.mxu0 0
    %70 = vmatpush1.bf16.msra.mxu0 0
    %71 = vmatprep.subr.bf16.mxu0 0
    %72 = vmatpush1.bf16.msra.mxu0 0
    %73 = vmatprep.subr.bf16.mxu0 0
    %74 = vmatpush1.bf16.msra.mxu0 0
    %75 = vmatprep.subr.bf16.mxu0 0
    %76 = vmatpush1.bf16.msra.mxu0 %v53
    %77 = vmatprep.subr.bf16.mxu0 0
    %78 = vmatpush1.bf16.msra.mxu0 %v52
    %79 = vmatprep.subr.bf16.mxu0 0
    %80 = vmatpush2.bf16.msra.mxu0 0
    %81 = vmatprep.subr.bf16.mxu0 0
    %82 = vmatpush2.bf16.msra.mxu0 0
    %83 = vmatprep.subr.bf16.mxu0 0
    %84 = vmatpush2.bf16.msra.mxu0 0
    %85 = vmatprep.subr.bf16.mxu0 0
    %86 = vmatpush2.bf16.msra.mxu0 0
    %87 = vmatprep.subr.bf16.mxu0 0
    %88 = vmatpush2.bf16.msra.mxu0 0
    %89 = vmatprep.subr.bf16.mxu0 0
    %90 = vmatpush2.bf16.msra.mxu0 0
    %91 = vmatprep.subr.bf16.mxu0 0
    %92 = vmatpush2.bf16.msra.mxu0 0
    %93 = vmatprep.subr.bf16.mxu0 0
    %94 = vmatpush2.bf16.msra.mxu0 0
    %95 = vmatprep.mubr.bf16.mxu0 0
    %96 = vmatmul.mubr.bf16.gmra.mxu0 %v58
    %v97 = vpop.f32.mrf.mxu0
    %v98 = vadd.f32 %v32, %v97
    %v99 = vpop.f32.mrf.mxu0
    %v100 = vpop.f32.mrf.mxu0
    %v101 = vadd.f32 %v32, %v100
    %v102 = vpop.f32.mrf.mxu0
    %103 = vmatprep.mubr.bf16.mxu0 0
    %104 = vmatmul.mubr.bf16.gmra.mxu0 %v61
    %v105 = vpop.f32.mrf.mxu0
    %v106 = vadd.f32 %v32, %v105
    %v107 = vpop.f32.mrf.mxu0
    %v108 = vpop.f32.mrf.mxu0
    %v109 = vadd.f32 %v32, %v108
    %v110 = vpop.f32.mrf.mxu0
    %111 = vdwg.mxu0
    %v112 = vlaneseq
    %v113 = vand.u32 %v112, 127
    %vm114 = vcmp.lt.s32.totalorder %v113, 2
    %v115 = vsel %vm114, %v98, -1e+30
    %v116 = vsel %vm114, %v101, -1e+30
    %v117 = vsel %vm114, %v106, -1e+30
    %v118 = vsel %vm114, %v109, -1e+30
    %119 = vmax.xlane.f32.xlu0 %v115
    %v120 = vpop.xlane.xlu0 %119
    %121 = vmax.xlane.f32.xlu0 %v116
    %v122 = vpop.xlane.xlu0 %121
    %123 = vmax.xlane.f32.xlu0 %v117
    %v124 = vpop.xlane.xlu0 %123
    %125 = vmax.xlane.f32.xlu0 %v118
    %v126 = vpop.xlane.xlu0 %125
    %v127 = vsub.f32 %v115, %v120
    %v128 = vsub.f32 %v116, %v122
    %v129 = vsub.f32 %v117, %v124
    %v130 = vsub.f32 %v118, %v126
    %v131 = vmul.f32 %v127, 1.442695
    %v132 = vpow.pop %v131
    %v133 = vmul.f32 %v128, 1.442695
    %v134 = vpow.pop %v133
    %v135 = vmul.f32 %v129, 1.442695
    %v136 = vpow.pop %v135
    %v137 = vmul.f32 %v130, 1.442695
    %v138 = vpow.pop %v137
    %139 = vadd.xlane.f32.xlu0 %v132
    %v140 = vpop.xlane.xlu0 %139
    %141 = vadd.xlane.f32.xlu0 %v134
    %v142 = vpop.xlane.xlu0 %141
    %143 = vadd.xlane.f32.xlu0 %v136
    %v144 = vpop.xlane.xlu0 %143
    %145 = vadd.xlane.f32.xlu0 %v138
    %v146 = vpop.xlane.xlu0 %145
    %v147 = vlog2.pop %v140
    %v148 = vmul.f32 %v147, 0.6931472
    %v149 = vlog2.pop %v142
    %v150 = vmul.f32 %v149, 0.6931472
    %v151 = vlog2.pop %v144
    %v152 = vmul.f32 %v151, 0.6931472
    %v153 = vlog2.pop %v146
    %v154 = vmul.f32 %v153, 0.6931472
    %v155 = vsub.f32 %v127, %v148
    %v156 = vsub.f32 %v128, %v150
    %v157 = vsub.f32 %v129, %v152
    %v158 = vsub.f32 %v130, %v154
    %v159 = vld [vmem:[%s3] sm:$0xff]
    %v160 = vld [vmem:[%s3 + $0x8] sm:$0xff]
    %v161 = vld [vmem:[%s3 + $0x10] sm:$0xff]
    %v162 = vld [vmem:[%s3 + $0x18] sm:$0xff]
    %163 = vset.pattern.permute.xlu0 0
    %164 = vperm.xlu0 %163, %v159
    %v165 = vpop.permute.xlu0 %164
    %166 = vset.pattern.permute.xlu0 0
    %167 = vperm.xlu0 %166, %v160
    %v168 = vpop.permute.xlu0 %167
    %169 = vset.pattern.permute.xlu0 0
    %170 = vperm.xlu0 %169, %v161
    %v171 = vpop.permute.xlu0 %170
    %172 = vset.pattern.permute.xlu0 0
    %173 = vperm.xlu0 %172, %v162
    %v174 = vpop.permute.xlu0 %173
    %vm175 = vcmp.eq.s32.totalorder %v113, %v165
    %vm176 = vcmp.eq.s32.totalorder %v113, %v168
    %vm177 = vcmp.eq.s32.totalorder %v113, %v171
    %vm178 = vcmp.eq.s32.totalorder %v113, %v174
    %v179 = vsel %vm175, %v155, 0.0
    %v180 = vsel %vm176, %v156, 0.0
    %v181 = vsel %vm177, %v157, 0.0
    %v182 = vsel %vm178, %v158, 0.0
    %183 = vadd.xlane.f32.xlu0 %v179
    %v184 = vpop.xlane.xlu0 %183
    %185 = vadd.xlane.f32.xlu0 %v180
    %v186 = vpop.xlane.xlu0 %185
    %187 = vadd.xlane.f32.xlu0 %v181
    %v188 = vpop.xlane.xlu0 %187
    %189 = vadd.xlane.f32.xlu0 %v182
    %v190 = vpop.xlane.xlu0 %189
    %v191 = vsub.f32 0.0, %v184
    %v192 = vsub.f32 0.0, %v186
    %v193 = vsub.f32 0.0, %v188
    %v194 = vsub.f32 0.0, %v190
    %v195 = vlaneseq
    %v196 = vshrl.u32 %v195, 7
    %v197 = vadd.s32 %v196, 8
    %v198 = vadd.s32 %v196, 16
    %v199 = vadd.s32 %v196, 24
    %s200 = smul.u32 0, 32
    %v201 = vstv %s200
    %v202 = vadd.s32 %v201, %v196
    %v203 = vadd.s32 %v201, %v197
    %v204 = vadd.s32 %v201, %v198
    %v205 = vadd.s32 %v201, %v199
    %vm206 = vcmp.lt.s32.totalorder %v202, 32
    %vm207 = vcmp.lt.s32.totalorder %v203, 32
    %vm208 = vcmp.lt.s32.totalorder %v204, 32
    %vm209 = vcmp.lt.s32.totalorder %v205, 32
    %v210 = vsel %vm206, %v191, 0.0
    %v211 = vsel %vm207, %v192, 0.0
    %v212 = vsel %vm208, %v193, 0.0
    %v213 = vsel %vm209, %v194, 0.0
    %vm214 = vcmask 7168
    %v215 = vsel %vm214, %v210, 0.0
    %v216 = vsel %vm214, %v211, 0.0
    %v217 = vadd.f32 %v215, %v216
    %v218 = vsel %vm214, %v212, 0.0
    %v219 = vadd.f32 %v217, %v218
    %v220 = vsel %vm214, %v213, 0.0
    %v221 = vadd.f32 %v219, %v220
    %222 = vadd.xlane.f32.xlu0 %v221
    %v223 = vpop.xlane.xlu0 %222
    %v224 = vrot.slane %v223, 4
    %v225 = vadd.f32 %v223, %v224
    %v226 = vrot.slane %v225, 2
    %v227 = vadd.f32 %v225, %v226
    %v228 = vrot.slane %v227, 1
    %v229 = vadd.f32 %v227, %v228
    %s230 = vtos %v229
    %s231 = scalar_lea.smem [#allocation2], 0
    %232 = sst [smem:[%s231]] %s230
    // Predicated region
    $region18: #{tpu_custom_call.1} parent=1 // pred_check
      _
    $region19: #{tpu_custom_call.1} parent=1 // pred_check_branch
      %234 = sbr.rel (0) target = $region21
    $region20: #{tpu_custom_call.1} parent=1 // pred_region
      %s236 = ssub.s32 16, 16
      %237 = vsyncadd [#allocation3], %s236
      %240 = dma.smem_to_hbm [#allocation2], 16, %s4, [#allocation3]
    $region21: #{tpu_custom_call.1} parent=1 // pred_fallthru
      _
    // Predicated region
    $region22: #{tpu_custom_call.1} parent=1 // pred_check
      _
    $region23: #{tpu_custom_call.1} parent=1 // pred_check_branch
      %242 = sbr.rel (0) target = $region25
    $region24: #{tpu_custom_call.1} parent=1 // pred_region
      %243 = dma.done [#allocation3], 16
    $region25: #{tpu_custom_call.1} parent=1 // pred_fallthru
      _
    %244 = sfence
    %245 = vsyncpa [#allocation3], 1

</llo_original>
